<compile_context>
chip_gen: v7x
topology: tpu7x:2x2x1
jax: 0.10.0
libtpu: 0.0.40
codegen_flags: <defaults>
</compile_context>

<pallas_src>
import functools
import numpy as np
import jax
import jax.numpy as jnp
from jax.experimental import pallas as pl
from jax.experimental.pallas import tpu as pltpu


def _make_divisible(v, divisor, min_value=None):
    if min_value is None:
        min_value = divisor
    new_v = max(min_value, int(v + divisor / 2) // divisor * divisor)
    if new_v < 0.9 * v:
        new_v += divisor
    return new_v


def _pool_factor(size, k=5, stride=4, pad=2):
    """1-D factor of AvgPool2d(k, stride, pad, count_include_pad=True): (out, size)."""
    out = (size + 2 * pad - k) // stride + 1
    M = np.zeros((out, size), dtype=np.float32)
    inv = 1.0 / k
    for i in range(out):
        for d in range(k):
            r = i * stride + d - pad
            if 0 <= r < size:
                M[i, r] += inv
    return M, out


def _upsample_factor(out_size, in_size):
    """1-D factor of UpsamplingBilinear2d(align_corners=True): (out_size, in_size)."""
    M = np.zeros((out_size, in_size), dtype=np.float32)
    if in_size == 1:
        M[:, 0] = 1.0
        return M
    for o in range(out_size):
        src = o * (in_size - 1) / (out_size - 1)
        lo = int(np.floor(src))
        hi = min(lo + 1, in_size - 1)
        f = src - lo
        M[o, lo] += 1.0 - f
        M[o, hi] += f
    return M


@functools.lru_cache(maxsize=None)
def _operators(h, w, stride):
    """Cached transposed dense pool/upsample operators for a given (H, W, stride)."""
    Ph, hp = _pool_factor(h, k=5, stride=stride, pad=2)
    Pw, wp = _pool_factor(w, k=5, stride=stride, pad=2)
    Uh = _upsample_factor(h, hp)
    Uw = _upsample_factor(w, wp)
    PT = np.ascontiguousarray(np.kron(Ph, Pw).T.astype(np.float32))   # (H*W, Hp*Wp)
    UT = np.ascontiguousarray(np.kron(Uh, Uw).T.astype(np.float32))   # (Hp*Wp, H*W)
    return jnp.asarray(PT), jnp.asarray(UT), hp, wp


def _pa_kernel(x_ref, pt_ref, ut_ref, w1_ref, b1_ref, w2_ref, b2_ref, o_ref):
    # x_ref: (tile_n*C, H*W) f32 -- H*W sits on the lane axis (lane-dense loads/stores).
    x = x_ref[...]

    # avg-pool as one MXU matmul: (rows, HW) @ (HW, HpWp) -> (rows, HpWp), f32 accumulation
    pooled = jnp.dot(x, pt_ref[...], preferred_element_type=jnp.float32)

    # conv1 (+ folded BN) and conv2 as block-diagonal matmuls over the whole tile
    h = jnp.dot(w1_ref[...], pooled, preferred_element_type=jnp.float32) + b1_ref[...]
    # hardswish: x * relu6(x + 3) / 6
    h = h * jnp.clip(h + 3.0, 0.0, 6.0) * (1.0 / 6.0)
    s = jnp.dot(w2_ref[...], h, preferred_element_type=jnp.float32) + b2_ref[...]

    # bilinear upsample as one MXU matmul with lane-dense output columns (HW)
    up = jnp.dot(s, ut_ref[...], preferred_element_type=jnp.float32)   # (rows, HW)

    # gate the identity (f32, lane-dense store)
    o_ref[...] = (x * jax.nn.sigmoid(up)).astype(o_ref.dtype)


def pa_forward(x_nchw, params, stride=4, eps=1e-5, tile_n=None):
    N, C, H, W = x_nchw.shape
    PT, UT, Hp, Wp = _operators(H, W, stride)
    assert H == Hp * stride and W == Wp * stride, "spatial dims must be divisible by stride"
    HW, HpWp = H * W, Hp * Wp
    mip = params["w1"].shape[0]

    # ---- tile selection: whole samples per tile, target ~512 rows, must divide N ----
    if tile_n is None:
        tile_n = max(1, min(N, 512 // max(C, 1)))
    while N % tile_n:
        tile_n -= 1
    tile_r = tile_n * C
    num_tiles = N // tile_n
    # (8,128) rule guards (lane-dense gate/store; sublane-aligned row tile)
    assert HW % 128 == 0, "H*W must be a multiple of 128 for a lane-dense output"
    assert tile_r % 8 == 0 or tile_r == N * C, "row tile must be a multiple of 8"

    # ---- fold eval-mode BatchNorm into conv1, build block-diagonal weights ----
    bn_scale = params["gamma"] * jax.lax.rsqrt(params["var"] + eps)          # (mip,)
    w1f = params["w1"] * bn_scale[:, None]                                   # (mip, C)
    b1f = (params["b1"] - params["mean"]) * bn_scale + params["beta"]        # (mip,)
    eye = jnp.eye(tile_n, dtype=jnp.float32)
    w1bd = jnp.kron(eye, w1f)                                                # (tile_n*mip, tile_r)
    w2bd = jnp.kron(eye, params["w2"])                                       # (tile_r, tile_n*mip)
    b1bd = jnp.tile(b1f, tile_n)[:, None]                                    # (tile_n*mip, 1)
    b2bd = jnp.tile(params["b2"], tile_n)[:, None]                           # (tile_r, 1)

    x_flat = x_nchw.reshape(N * C, HW)   # NCHW-native: free reshape, no transpose

    nc = N * C
    flops = int(2 * nc * HW * HpWp          # pool matmul
                + 2 * nc * HpWp * HW        # upsample matmul
                + 4 * N * mip * C * HpWp    # conv1 + conv2
                + 6 * nc * HW)              # gate / hswish-ish elementwise
    cost = pl.CostEstimate(
        flops=flops,
        transcendentals=int(nc * HW),                         # sigmoid
        bytes_accessed=int(8 * nc * HW + 4 * (PT.size + UT.size)),
    )

    out_flat = pl.pallas_call(
        _pa_kernel,
        out_shape=jax.ShapeDtypeStruct((N * C, HW), x_nchw.dtype),
        grid=(num_tiles,),
        in_specs=[
            pl.BlockSpec((tile_r, HW), lambda i: (i, 0)),          # x tile (double-buffered)
            pl.BlockSpec((HW, HpWp), lambda i: (0, 0)),            # pool operator (resident)
            pl.BlockSpec((HpWp, HW), lambda i: (0, 0)),            # upsample operator (resident)
            pl.BlockSpec((tile_n * mip, tile_r), lambda i: (0, 0)),  # block-diag conv1 (BN folded)
            pl.BlockSpec((tile_n * mip, 1), lambda i: (0, 0)),       # conv1 bias
            pl.BlockSpec((tile_r, tile_n * mip), lambda i: (0, 0)),  # block-diag conv2
            pl.BlockSpec((tile_r, 1), lambda i: (0, 0)),             # conv2 bias
        ],
        out_specs=pl.BlockSpec((tile_r, HW), lambda i: (i, 0)),
        compiler_params=pltpu.CompilerParams(dimension_semantics=("parallel",)),
        cost_estimate=cost,
    )(x_flat, PT, UT, w1bd, b1bd, w2bd, b2bd)

    return out_flat.reshape(N, C, H, W)


def pa_reference(x_nchw, params, stride=4, eps=1e-5):
    """Pure-JAX f32 reference (separable pool/upsample, eval-mode BN)."""
    N, C, H, W = x_nchw.shape
    Ph, Hp = _pool_factor(H, k=5, stride=stride, pad=2)
    Pw, Wp = _pool_factor(W, k=5, stride=stride, pad=2)
    Uh = _upsample_factor(H, Hp)
    Uw = _upsample_factor(W, Wp)

    x = x_nchw
    pooled = jnp.einsum("ph,nchw->ncpw", jnp.asarray(Ph), x)
    pooled = jnp.einsum("qw,ncpw->ncpq", jnp.asarray(Pw), pooled)
    h = jnp.einsum("mc,ncpq->nmpq", params["w1"], pooled) + params["b1"][None, :, None, None]
    inv_std = jax.lax.rsqrt(params["var"] + eps)
    h = ((h - params["mean"][None, :, None, None]) * (inv_std * params["gamma"])[None, :, None, None]
         + params["beta"][None, :, None, None])
    h = h * jnp.clip(h + 3.0, 0.0, 6.0) / 6.0
    s = jnp.einsum("cm,nmpq->ncpq", params["w2"], h) + params["b2"][None, :, None, None]
    up = jnp.einsum("hp,ncpq->nchq", jnp.asarray(Uh), s)
    up = jnp.einsum("wq,nchq->nchw", jnp.asarray(Uw), up)
    return x * jax.nn.sigmoid(up)


if __name__ == "__main__":
    key = jax.random.PRNGKey(0)
    N, C, H, W = 2, 16, 16, 16
    stride, reduction = 4, 16
    mip = _make_divisible(C // reduction, 8)   # -> 8

    ks = jax.random.split(key, 9)
    x = jax.random.normal(ks[0], (N, C, H, W), dtype=jnp.float32)
    params = dict(
        w1=0.2 * jax.random.normal(ks[1], (mip, C), jnp.float32),
        b1=0.1 * jax.random.normal(ks[2], (mip,), jnp.float32),
        gamma=1.0 + 0.1 * jax.random.normal(ks[3], (mip,), jnp.float32),
        beta=0.1 * jax.random.normal(ks[4], (mip,), jnp.float32),
        mean=0.1 * jax.random.normal(ks[5], (mip,), jnp.float32),
        var=1.0 + 0.1 * jnp.abs(jax.random.normal(ks[6], (mip,), jnp.float32)),
        w2=0.2 * jax.random.normal(ks[7], (C, mip), jnp.float32),
        b2=0.1 * jax.random.normal(ks[8], (C,), jnp.float32),
    )

    # tile_n=1 -> grid=(2,) so the multi-tile (pipelined / parallel) path is exercised.
    out = jax.block_until_ready(pa_forward(x, params, stride=stride, tile_n=1))
    ref = jax.block_until_ready(pa_reference(x, params, stride=stride))

    assert out.shape == (N, C, H, W)
    # all-f32 path; loose tolerance only to stay robust to MXU precision defaults
    np.testing.assert_allclose(np.asarray(out), np.asarray(ref), rtol=2e-2, atol=2e-2)
    print("KERNEL_OK")
</pallas_src>

<mosaic_0001>
module attributes {stable_mosaic.version = 11 : i64} {
  func.func @_pa_kernel(%arg0: i32, %arg1: memref<16x256xf32, #tpu.memory_space<vmem>>, %arg2: memref<256x16xf32, #tpu.memory_space<vmem>>, %arg3: memref<16x256xf32, #tpu.memory_space<vmem>>, %arg4: memref<8x16xf32, #tpu.memory_space<vmem>>, %arg5: memref<8x1xf32, #tpu.memory_space<vmem>>, %arg6: memref<16x8xf32, #tpu.memory_space<vmem>>, %arg7: memref<16x1xf32, #tpu.memory_space<vmem>>, %arg8: memref<16x256xf32, #tpu.memory_space<vmem>>) attributes {dimension_semantics = [#tpu.dimension_semantics<parallel>], iteration_bounds = array<i64: 2>, scalar_prefetch = 0 : i64, scratch_operands = 0 : i64, tpu.core_type = #tpu.core_type<tc>, window_params = [{transform_indices = @transform_0, window_bounds = array<i64: 16, 256>}, {pipeline_mode = #tpu.pipeline_mode<synchronous>, transform_indices = @transform_1, window_bounds = array<i64: 256, 16>}, {pipeline_mode = #tpu.pipeline_mode<synchronous>, transform_indices = @transform_2, window_bounds = array<i64: 16, 256>}, {pipeline_mode = #tpu.pipeline_mode<synchronous>, transform_indices = @transform_3, window_bounds = array<i64: 8, 16>}, {pipeline_mode = #tpu.pipeline_mode<synchronous>, transform_indices = @transform_4, window_bounds = array<i64: 8, 1>}, {pipeline_mode = #tpu.pipeline_mode<synchronous>, transform_indices = @transform_5, window_bounds = array<i64: 16, 8>}, {pipeline_mode = #tpu.pipeline_mode<synchronous>, transform_indices = @transform_6, window_bounds = array<i64: 16, 1>}, {transform_indices = @transform_7, window_bounds = array<i64: 16, 256>}]} {
    %c0 = arith.constant 0 : index
    %c0_0 = arith.constant 0 : index
    %0 = vector.load %arg1[%c0, %c0_0] : memref<16x256xf32, #tpu.memory_space<vmem>>, vector<16x256xf32>
    %c0_1 = arith.constant 0 : index
    %c0_2 = arith.constant 0 : index
    %1 = vector.load %arg2[%c0_1, %c0_2] : memref<256x16xf32, #tpu.memory_space<vmem>>, vector<256x16xf32>
    %cst = arith.constant dense<0.000000e+00> : vector<16x16xf32>
    %2 = tpu.matmul %0, %1, %cst {dimension_numbers = #tpu.dot_dimension_numbers<[1], [0], [0], [1], [0, 0, 1, 1], [], []>} : vector<16x256xf32>, vector<256x16xf32>, vector<16x16xf32> -> vector<16x16xf32>
    %c0_3 = arith.constant 0 : index
    %c0_4 = arith.constant 0 : index
    %3 = vector.load %arg4[%c0_3, %c0_4] : memref<8x16xf32, #tpu.memory_space<vmem>>, vector<8x16xf32>
    %cst_5 = arith.constant dense<0.000000e+00> : vector<8x16xf32>
    %4 = tpu.matmul %3, %2, %cst_5 {dimension_numbers = #tpu.dot_dimension_numbers<[1], [0], [0], [1], [0, 0, 1, 1], [], []>} : vector<8x16xf32>, vector<16x16xf32>, vector<8x16xf32> -> vector<8x16xf32>
    %c0_6 = arith.constant 0 : index
    %c0_7 = arith.constant 0 : index
    %5 = vector.load %arg5[%c0_6, %c0_7] : memref<8x1xf32, #tpu.memory_space<vmem>>, vector<8x1xf32>
    %6 = vector.broadcast %5 : vector<8x1xf32> to vector<8x16xf32>
    %7 = arith.addf %4, %6 : vector<8x16xf32>
    %cst_8 = arith.constant 3.000000e+00 : f32
    %8 = vector.broadcast %cst_8 : f32 to vector<8x16xf32>
    %9 = arith.addf %7, %8 : vector<8x16xf32>
    %cst_9 = arith.constant 0.000000e+00 : f32
    %cst_10 = arith.constant 6.000000e+00 : f32
    %10 = vector.broadcast %cst_9 : f32 to vector<8x16xf32>
    %11 = arith.maximumf %10, %9 : vector<8x16xf32>
    %12 = vector.broadcast %cst_10 : f32 to vector<8x16xf32>
    %13 = arith.minimumf %12, %11 : vector<8x16xf32>
    %14 = arith.mulf %7, %13 : vector<8x16xf32>
    %cst_11 = arith.constant 0.166666672 : f32
    %15 = vector.broadcast %cst_11 : f32 to vector<8x16xf32>
    %16 = arith.mulf %14, %15 : vector<8x16xf32>
    %c0_12 = arith.constant 0 : index
    %c0_13 = arith.constant 0 : index
    %17 = vector.load %arg6[%c0_12, %c0_13] : memref<16x8xf32, #tpu.memory_space<vmem>>, vector<16x8xf32>
    %cst_14 = arith.constant dense<0.000000e+00> : vector<16x16xf32>
    %18 = tpu.matmul %17, %16, %cst_14 {dimension_numbers = #tpu.dot_dimension_numbers<[1], [0], [0], [1], [0, 0, 1, 1], [], []>} : vector<16x8xf32>, vector<8x16xf32>, vector<16x16xf32> -> vector<16x16xf32>
    %c0_15 = arith.constant 0 : index
    %c0_16 = arith.constant 0 : index
    %19 = vector.load %arg7[%c0_15, %c0_16] : memref<16x1xf32, #tpu.memory_space<vmem>>, vector<16x1xf32>
    %20 = vector.broadcast %19 : vector<16x1xf32> to vector<16x16xf32>
    %21 = arith.addf %18, %20 : vector<16x16xf32>
    %c0_17 = arith.constant 0 : index
    %c0_18 = arith.constant 0 : index
    %22 = vector.load %arg3[%c0_17, %c0_18] : memref<16x256xf32, #tpu.memory_space<vmem>>, vector<16x256xf32>
    %cst_19 = arith.constant dense<0.000000e+00> : vector<16x256xf32>
    %23 = tpu.matmul %21, %22, %cst_19 {dimension_numbers = #tpu.dot_dimension_numbers<[1], [0], [0], [1], [0, 0, 1, 1], [], []>} : vector<16x16xf32>, vector<16x256xf32>, vector<16x256xf32> -> vector<16x256xf32>
    %24 = arith.negf %23 : vector<16x256xf32>
    %25 = math.exp %24 : vector<16x256xf32>
    %cst_20 = arith.constant 1.000000e+00 : f32
    %26 = vector.broadcast %cst_20 : f32 to vector<16x256xf32>
    %27 = arith.addf %26, %25 : vector<16x256xf32>
    %28 = arith.divf %26, %27 : vector<16x256xf32>
    %29 = arith.mulf %0, %28 : vector<16x256xf32>
    %c0_21 = arith.constant 0 : index
    %c0_22 = arith.constant 0 : index
    %30 = vector.load %arg8[%c0_21, %c0_22] : memref<16x256xf32, #tpu.memory_space<vmem>>, vector<16x256xf32>
    tpu.vector_store %arg8[%c0_21, %c0_22], %29 {strides = array<i32>} : memref<16x256xf32, #tpu.memory_space<vmem>>, vector<16x256xf32>,
    return
  }
  func.func @transform_0(%arg0: i32) -> (i32, i32) {
    %c0_i32 = arith.constant 0 : i32
    %c0_i32_0 = arith.constant 0 : i32
    return %arg0, %c0_i32 : i32, i32
  }
  func.func @transform_1(%arg0: i32) -> (i32, i32) {
    %c0_i32 = arith.constant 0 : i32
    %c0_i32_0 = arith.constant 0 : i32
    %c0_i32_1 = arith.constant 0 : i32
    return %c0_i32, %c0_i32_0 : i32, i32
  }
  func.func @transform_2(%arg0: i32) -> (i32, i32) {
    %c0_i32 = arith.constant 0 : i32
    %c0_i32_0 = arith.constant 0 : i32
    %c0_i32_1 = arith.constant 0 : i32
    return %c0_i32, %c0_i32_0 : i32, i32
  }
  func.func @transform_3(%arg0: i32) -> (i32, i32) {
    %c0_i32 = arith.constant 0 : i32
    %c0_i32_0 = arith.constant 0 : i32
    %c0_i32_1 = arith.constant 0 : i32
    return %c0_i32, %c0_i32_0 : i32, i32
  }
  func.func @transform_4(%arg0: i32) -> (i32, i32) {
    %c0_i32 = arith.constant 0 : i32
    %c0_i32_0 = arith.constant 0 : i32
    %c0_i32_1 = arith.constant 0 : i32
    return %c0_i32, %c0_i32_0 : i32, i32
  }
  func.func @transform_5(%arg0: i32) -> (i32, i32) {
    %c0_i32 = arith.constant 0 : i32
    %c0_i32_0 = arith.constant 0 : i32
    %c0_i32_1 = arith.constant 0 : i32
    return %c0_i32, %c0_i32_0 : i32, i32
  }
  func.func @transform_6(%arg0: i32) -> (i32, i32) {
    %c0_i32 = arith.constant 0 : i32
    %c0_i32_0 = arith.constant 0 : i32
    %c0_i32_1 = arith.constant 0 : i32
    return %c0_i32, %c0_i32_0 : i32, i32
  }
  func.func @transform_7(%arg0: i32) -> (i32, i32) {
    %c0_i32 = arith.constant 0 : i32
    %c0_i32_0 = arith.constant 0 : i32
    return %arg0, %c0_i32 : i32, i32
  }
}

</mosaic_0001>

<llo_original>
// kernel: tpu_custom_call.1
$region0: #{tpu_custom_call.1}
  #allocation0 [shape = 'u32[]', space=smem, size = 0x4, offset = 0x4, fixed_abs, tag = 'smem constant byte address 0x4 - core index']
  #allocation1 [shape = 'u32[144,128]{1,0:T(1,128)}', space=vmem, size = 0x12000, scoped, tag = 'internal scratch']
  %s0 = inlined_call_operand.vmem [shape: f32[32,256], index: 0, kind: input, shape index: {}]
  %s1 = inlined_call_operand.vmem [shape: f32[256,16], index: 1, kind: input, shape index: {}]
  %s2 = inlined_call_operand.vmem [shape: f32[16,256], index: 2, kind: input, shape index: {}]
  %s3 = inlined_call_operand.vmem [shape: f32[8,16], index: 3, kind: input, shape index: {}]
  %s4 = inlined_call_operand.vmem [shape: f32[8,1], index: 4, kind: input, shape index: {}]
  %s5 = inlined_call_operand.vmem [shape: f32[16,8], index: 5, kind: input, shape index: {}]
  %s6 = inlined_call_operand.vmem [shape: f32[16,1], index: 6, kind: input, shape index: {}]
  %s7 = inlined_call_operand.hbm [shape: f32[32,256], index: 7, kind: output, shape index: {}]
  %s8 = sld [smem:[#allocation0]]
  $region61: #{tpu_custom_call.1} parent=0
    _
  %s10 = ssub.s32 1, %s8
  %s11 = scalar_select 0, %s10, %s8
  $region1: #{tpu_custom_call.1} parent=0
    #allocation2 [shape = 'u8[32768]{0}', space=vmem, size = 0x8000, scoped, tag = 'output window, operand 0']
    #allocation3 [shape = 's32[2]{0}', space=sflag, size = 0x8, scoped, tag = 'scoped memory for tpu_custom_call.1']
    %12 = vsyncpa [#allocation3], 0
    %s13 = scalar_lea.sflag [#allocation3], 1
    %14 = vsyncpa %s13, 0
    loop: start=0, step=1, limit=4
    $region2: #{tpu_custom_call.1} parent=1 // loop_pre_header
      _
    $region3: #{tpu_custom_call.1} parent=1 // loop_header
      %s16 = sphi 0, %s20
      %p17 = scmp.ge.s32.totalorder %s16, 4
      %s26 = sphi 0, %s28
      %s29 = sphi 0, %s26
      %s30 = sphi 0, %s29
      %s46 = sphi 0, %s30
      %s50 = sphi 0, %s50
      %s52 = sphi 0, %s50
      %s53 = sphi 0, %s52
      %s67 = sphi 0, %s53
      %s71 = sphi 0, %s71
      %s73 = sphi 0, %s71
      %s74 = sphi 0, %s73
      %s88 = sphi 0, %s74
      %s92 = sphi 0, %s92
      %s94 = sphi 0, %s92
      %s95 = sphi 0, %s94
      %s109 = sphi 0, %s95
      %s113 = sphi 0, %s113
      %s115 = sphi 0, %s113
      %s116 = sphi 0, %s115
      %s130 = sphi 0, %s116
      %s134 = sphi 0, %s134
      %s136 = sphi 0, %s134
      %s137 = sphi 0, %s136
      %s151 = sphi 0, %s137
      %s155 = sphi 0, %s155
      %s157 = sphi 0, %s155
      %s158 = sphi 0, %s157
      %s172 = sphi 0, %s158
      %s178 = sphi 0, %s180
      %s181 = sphi 0, %s178
      %s182 = sphi 0, %s181
      %s198 = sphi 0, %s182
    $region4: #{tpu_custom_call.1} parent=1 // loop_header_branch
      %19 = sbr.rel (%p17) target = $region8
    $region5: #{tpu_custom_call.1} parent=1 // loop_body
      %s21 = ssub.s32 %s16, 1
      %s22 = ssub.s32 %s16, 2
      %s23 = sadd.s32 %s16, 1
      %s24 = ssub.s32 %s16, %s23
      %p25 = scmp.eq.s32.totalorder %s24, 0
      %s27 = sadd.s32 %s26, 1
      %s28 = scalar_select %p25, %s26, %s27
      %p31 = pneg %p25
      %p32 = scmp.eq.s32.totalorder %s16, 1
      %p33 = por %p31, %p32
      %p34 = scmp.ne.s32.totalorder %s26, %s29
      %p35 = scmp.eq.s32.totalorder %s16, 0
      %p36 = por %p34, %p35
      %p37 = scmp.ne.s32.totalorder %s26, %s29
      %p38 = scmp.eq.s32.totalorder %s21, 1
      %p39 = por %p37, %p38
      %p40 = scmp.ne.s32.totalorder %s29, %s30
      %p41 = scmp.eq.s32.totalorder %s21, 0
      %p42 = por %p40, %p41
      %p43 = scmp.ne.s32.totalorder %s29, %s30
      %p44 = scmp.eq.s32.totalorder %s22, 1
      %p45 = por %p43, %p44
      %p47 = scmp.ne.s32.totalorder %s30, %s46
      %p48 = scmp.eq.s32.totalorder %s22, 0
      %p49 = por %p47, %p48
      %s51 = sadd.s32 %s50, 1
      %p54 = scmp.eq.s32.totalorder %s16, 1
      %p55 = scmp.ne.s32.totalorder %s50, %s52
      %p56 = scmp.eq.s32.totalorder %s16, 0
      %p57 = por %p55, %p56
      %p58 = scmp.ne.s32.totalorder %s50, %s52
      %p59 = scmp.eq.s32.totalorder %s21, 1
      %p60 = por %p58, %p59
      %p61 = scmp.ne.s32.totalorder %s52, %s53
      %p62 = scmp.eq.s32.totalorder %s21, 0
      %p63 = por %p61, %p62
      %p64 = scmp.ne.s32.totalorder %s52, %s53
      %p65 = scmp.eq.s32.totalorder %s22, 1
      %p66 = por %p64, %p65
      %p68 = scmp.ne.s32.totalorder %s53, %s67
      %p69 = scmp.eq.s32.totalorder %s22, 0
      %p70 = por %p68, %p69
      %s72 = sadd.s32 %s71, 1
      %p75 = scmp.eq.s32.totalorder %s16, 1
      %p76 = scmp.ne.s32.totalorder %s71, %s73
      %p77 = scmp.eq.s32.totalorder %s16, 0
      %p78 = por %p76, %p77
      %p79 = scmp.ne.s32.totalorder %s71, %s73
      %p80 = scmp.eq.s32.totalorder %s21, 1
      %p81 = por %p79, %p80
      %p82 = scmp.ne.s32.totalorder %s73, %s74
      %p83 = scmp.eq.s32.totalorder %s21, 0
      %p84 = por %p82, %p83
      %p85 = scmp.ne.s32.totalorder %s73, %s74
      %p86 = scmp.eq.s32.totalorder %s22, 1
      %p87 = por %p85, %p86
      %p89 = scmp.ne.s32.totalorder %s74, %s88
      %p90 = scmp.eq.s32.totalorder %s22, 0
      %p91 = por %p89, %p90
      %s93 = sadd.s32 %s92, 1
      %p96 = scmp.eq.s32.totalorder %s16, 1
      %p97 = scmp.ne.s32.totalorder %s92, %s94
      %p98 = scmp.eq.s32.totalorder %s16, 0
      %p99 = por %p97, %p98
      %p100 = scmp.ne.s32.totalorder %s92, %s94
      %p101 = scmp.eq.s32.totalorder %s21, 1
      %p102 = por %p100, %p101
      %p103 = scmp.ne.s32.totalorder %s94, %s95
      %p104 = scmp.eq.s32.totalorder %s21, 0
      %p105 = por %p103, %p104
      %p106 = scmp.ne.s32.totalorder %s94, %s95
      %p107 = scmp.eq.s32.totalorder %s22, 1
      %p108 = por %p106, %p107
      %p110 = scmp.ne.s32.totalorder %s95, %s109
      %p111 = scmp.eq.s32.totalorder %s22, 0
      %p112 = por %p110, %p111
      %s114 = sadd.s32 %s113, 1
      %p117 = scmp.eq.s32.totalorder %s16, 1
      %p118 = scmp.ne.s32.totalorder %s113, %s115
      %p119 = scmp.eq.s32.totalorder %s16, 0
      %p120 = por %p118, %p119
      %p121 = scmp.ne.s32.totalorder %s113, %s115
      %p122 = scmp.eq.s32.totalorder %s21, 1
      %p123 = por %p121, %p122
      %p124 = scmp.ne.s32.totalorder %s115, %s116
      %p125 = scmp.eq.s32.totalorder %s21, 0
      %p126 = por %p124, %p125
      %p127 = scmp.ne.s32.totalorder %s115, %s116
      %p128 = scmp.eq.s32.totalorder %s22, 1
      %p129 = por %p127, %p128
      %p131 = scmp.ne.s32.totalorder %s116, %s130
      %p132 = scmp.eq.s32.totalorder %s22, 0
      %p133 = por %p131, %p132
      %s135 = sadd.s32 %s134, 1
      %p138 = scmp.eq.s32.totalorder %s16, 1
      %p139 = scmp.ne.s32.totalorder %s134, %s136
      %p140 = scmp.eq.s32.totalorder %s16, 0
      %p141 = por %p139, %p140
      %p142 = scmp.ne.s32.totalorder %s134, %s136
      %p143 = scmp.eq.s32.totalorder %s21, 1
      %p144 = por %p142, %p143
      %p145 = scmp.ne.s32.totalorder %s136, %s137
      %p146 = scmp.eq.s32.totalorder %s21, 0
      %p147 = por %p145, %p146
      %p148 = scmp.ne.s32.totalorder %s136, %s137
      %p149 = scmp.eq.s32.totalorder %s22, 1
      %p150 = por %p148, %p149
      %p152 = scmp.ne.s32.totalorder %s137, %s151
      %p153 = scmp.eq.s32.totalorder %s22, 0
      %p154 = por %p152, %p153
      %s156 = sadd.s32 %s155, 1
      %p159 = scmp.eq.s32.totalorder %s16, 1
      %p160 = scmp.ne.s32.totalorder %s155, %s157
      %p161 = scmp.eq.s32.totalorder %s16, 0
      %p162 = por %p160, %p161
      %p163 = scmp.ne.s32.totalorder %s155, %s157
      %p164 = scmp.eq.s32.totalorder %s21, 1
      %p165 = por %p163, %p164
      %p166 = scmp.ne.s32.totalorder %s157, %s158
      %p167 = scmp.eq.s32.totalorder %s21, 0
      %p168 = por %p166, %p167
      %p169 = scmp.ne.s32.totalorder %s157, %s158
      %p170 = scmp.eq.s32.totalorder %s22, 1
      %p171 = por %p169, %p170
      %p173 = scmp.ne.s32.totalorder %s158, %s172
      %p174 = scmp.eq.s32.totalorder %s22, 0
      %p175 = por %p173, %p174
      %s176 = ssub.s32 %s16, %s23
      %p177 = scmp.eq.s32.totalorder %s176, 0
      %s179 = sadd.s32 %s178, 1
      %s180 = scalar_select %p177, %s178, %s179
      %p183 = pneg %p177
      %p184 = scmp.eq.s32.totalorder %s16, 1
      %p185 = por %p183, %p184
      %p186 = scmp.ne.s32.totalorder %s178, %s181
      %p187 = scmp.eq.s32.totalorder %s16, 0
      %p188 = por %p186, %p187
      %p189 = scmp.ne.s32.totalorder %s178, %s181
      %p190 = scmp.eq.s32.totalorder %s21, 1
      %p191 = por %p189, %p190
      %p192 = scmp.ne.s32.totalorder %s181, %s182
      %p193 = scmp.eq.s32.totalorder %s21, 0
      %p194 = por %p192, %p193
      %p195 = scmp.ne.s32.totalorder %s181, %s182
      %p196 = scmp.eq.s32.totalorder %s22, 1
      %p197 = por %p195, %p196
      %p199 = scmp.ne.s32.totalorder %s182, %s198
      %p200 = scmp.eq.s32.totalorder %s22, 0
      %p201 = por %p199, %p200
      %p202 = scmp.le.s32.totalorder 1, %s16
      %p203 = scmp.lt.s32.totalorder %s16, 3
      %p204 = pnand %p202, %p203
      %p205 = pneg %p204
      // Predicated region
      $region9: #{tpu_custom_call.1} parent=5 // pred_check
        _
      $region10: #{tpu_custom_call.1} parent=5 // pred_check_branch
        %207 = sbr.rel (%p204) target = $region12
      $region11: #{tpu_custom_call.1} parent=5 // pred_region
        %s208 = ssub.s32 %s16, 1
        // Predicated region
        $region13: #{tpu_custom_call.1} parent=11 // pred_check
          %p209 = pneg %p63
        $region14: #{tpu_custom_call.1} parent=11 // pred_check_branch
          %211 = sbr.rel (%p209) target = $region16
        $region15: #{tpu_custom_call.1} parent=11 // pred_region
          _
        $region16: #{tpu_custom_call.1} parent=11 // pred_fallthru
          _
        // Predicated region
        $region17: #{tpu_custom_call.1} parent=11 // pred_check
          %p212 = pneg %p84
        $region18: #{tpu_custom_call.1} parent=11 // pred_check_branch
          %214 = sbr.rel (%p212) target = $region20
        $region19: #{tpu_custom_call.1} parent=11 // pred_region
          _
        $region20: #{tpu_custom_call.1} parent=11 // pred_fallthru
          _
        // Predicated region
        $region21: #{tpu_custom_call.1} parent=11 // pred_check
          %p215 = pneg %p105
        $region22: #{tpu_custom_call.1} parent=11 // pred_check_branch
          %217 = sbr.rel (%p215) target = $region24
        $region23: #{tpu_custom_call.1} parent=11 // pred_region
          _
        $region24: #{tpu_custom_call.1} parent=11 // pred_fallthru
          _
        // Predicated region
        $region25: #{tpu_custom_call.1} parent=11 // pred_check
          %p218 = pneg %p126
        $region26: #{tpu_custom_call.1} parent=11 // pred_check_branch
          %220 = sbr.rel (%p218) target = $region28
        $region27: #{tpu_custom_call.1} parent=11 // pred_region
          _
        $region28: #{tpu_custom_call.1} parent=11 // pred_fallthru
          _
        // Predicated region
        $region29: #{tpu_custom_call.1} parent=11 // pred_check
          %p221 = pneg %p147
        $region30: #{tpu_custom_call.1} parent=11 // pred_check_branch
          %223 = sbr.rel (%p221) target = $region32
        $region31: #{tpu_custom_call.1} parent=11 // pred_region
          _
        $region32: #{tpu_custom_call.1} parent=11 // pred_fallthru
          _
        // Predicated region
        $region33: #{tpu_custom_call.1} parent=11 // pred_check
          %p224 = pneg %p168
        $region34: #{tpu_custom_call.1} parent=11 // pred_check_branch
          %226 = sbr.rel (%p224) target = $region36
        $region35: #{tpu_custom_call.1} parent=11 // pred_region
          _
        $region36: #{tpu_custom_call.1} parent=11 // pred_fallthru
          _
      $region12: #{tpu_custom_call.1} parent=5 // pred_fallthru
        _
      %p227 = scmp.lt.s32.totalorder %s16, 2
      // Predicated region
      $region37: #{tpu_custom_call.1} parent=5 // pred_check
        %p228 = pneg %p227
      $region38: #{tpu_custom_call.1} parent=5 // pred_check_branch
        %230 = sbr.rel (%p228) target = $region40
      $region39: #{tpu_custom_call.1} parent=5 // pred_region
        // Predicated region
        $region41: #{tpu_custom_call.1} parent=39 // pred_check
          %p231 = pneg %p36
        $region42: #{tpu_custom_call.1} parent=39 // pred_check_branch
          %233 = sbr.rel (%p231) target = $region44
        $region43: #{tpu_custom_call.1} parent=39 // pred_region
          %s234 = smul.u32 2, %s16
          %p235 = scmp.lt.s32.totalorder %s234, 3
          %s236 = scalar_select %p235, %s234, 3
          %s237 = smul.addr %s236, 2
          %s238 = smul.addr %s237, 8
          %s239 = scalar_lea.vmem %s0, %s238
          %s240 = smul.u32 2, %s16
        $region44: #{tpu_custom_call.1} parent=39 // pred_fallthru
          _
      $region40: #{tpu_custom_call.1} parent=5 // pred_fallthru
        _
      %p241 = scmp.le.s32.totalorder 1, %s16
      %p242 = scmp.lt.s32.totalorder %s16, 3
      %p243 = pnand %p241, %p242
      %p244 = pneg %p243
      // Predicated region
      $region45: #{tpu_custom_call.1} parent=5 // pred_check
        _
      $region46: #{tpu_custom_call.1} parent=5 // pred_check_branch
        %246 = sbr.rel (%p243) target = $region48
      $region47: #{tpu_custom_call.1} parent=5 // pred_region
        %s247 = ssub.s32 %s16, 1
        %s248 = smul.u32 2, %s21
        %p249 = scmp.lt.s32.totalorder %s248, 3
        %s250 = scalar_select %p249, %s248, 3
        %s251 = smul.addr %s250, 2
        %s252 = smul.addr %s251, 8
        %s253 = scalar_lea.vmem %s0, %s252
        %p254 = pneg %p42
        %p255 = pneg %p39
        %p256 = pneg %p63
        %p257 = pneg %p60
        %p258 = pneg %p84
        %p259 = pneg %p81
        %p260 = pneg %p105
        %p261 = pneg %p102
        %p262 = pneg %p126
        %p263 = pneg %p123
        %p264 = pneg %p147
        %p265 = pneg %p144
        %p266 = pneg %p168
        %p267 = pneg %p165
        %p268 = pneg %p194
        %p269 = pneg %p191
        %s270 = sand.u32 %s181, 1
        %s271 = scalar_lea.sflag [#allocation3], %s270
        %s272 = sand.u32 %s181, 1
        %s273 = smul.addr %s272, 32
        %s274 = scalar_lea.vmem [#allocation2], %s273
        %s275 = smul.u32 2, %s21
        %p276 = scmp.lt.s32.totalorder %s275, 3
        %s277 = scalar_select %p276, %s275, 3
        %s278 = smul.addr %s277, 2
        %s279 = smul.addr %s278, 8
        %s280 = scalar_lea.vmem %s0, %s279
        %s281 = smul.u32 2, %s21
        %s282 = smul.u32 2, %s21
        %v283 = vld [vmem:[%s280] sm:$0xff]
        %v284 = vld [vmem:[%s280 + $0x8] sm:$0xff]
        %v285 = vld [vmem:[%s280 + $0x10] sm:$0xff]
        %v286 = vld [vmem:[%s280 + $0x18] sm:$0xff]
        %v287 = vld [vmem:[%s1] sm:$0xff]
        %v288 = vld [vmem:[%s1 + $0x8] sm:$0xff]
        %v289 = vld [vmem:[%s1 + $0x10] sm:$0xff]
        %v290 = vld [vmem:[%s1 + $0x18] sm:$0xff]
        %v291 = vld [vmem:[%s1 + $0x20] sm:$0xff]
        %v292 = vld [vmem:[%s1 + $0x28] sm:$0xff]
        %v293 = vld [vmem:[%s1 + $0x30] sm:$0xff]
        %v294 = vld [vmem:[%s1 + $0x38] sm:$0xff]
        %v295 = vld [vmem:[%s1 + $0x40] sm:$0xff]
        %v296 = vld [vmem:[%s1 + $0x48] sm:$0xff]
        %v297 = vld [vmem:[%s1 + $0x50] sm:$0xff]
        %v298 = vld [vmem:[%s1 + $0x58] sm:$0xff]
        %v299 = vld [vmem:[%s1 + $0x60] sm:$0xff]
        %v300 = vld [vmem:[%s1 + $0x68] sm:$0xff]
        %v301 = vld [vmem:[%s1 + $0x70] sm:$0xff]
        %v302 = vld [vmem:[%s1 + $0x78] sm:$0xff]
        %v303 = vld [vmem:[%s1 + $0x80] sm:$0xff]
        %v304 = vld [vmem:[%s1 + $0x88] sm:$0xff]
        %v305 = vld [vmem:[%s1 + $0x90] sm:$0xff]
        %v306 = vld [vmem:[%s1 + $0x98] sm:$0xff]
        %v307 = vld [vmem:[%s1 + $0xa0] sm:$0xff]
        %v308 = vld [vmem:[%s1 + $0xa8] sm:$0xff]
        %v309 = vld [vmem:[%s1 + $0xb0] sm:$0xff]
        %v310 = vld [vmem:[%s1 + $0xb8] sm:$0xff]
        %v311 = vld [vmem:[%s1 + $0xc0] sm:$0xff]
        %v312 = vld [vmem:[%s1 + $0xc8] sm:$0xff]
        %v313 = vld [vmem:[%s1 + $0xd0] sm:$0xff]
        %v314 = vld [vmem:[%s1 + $0xd8] sm:$0xff]
        %v315 = vld [vmem:[%s1 + $0xe0] sm:$0xff]
        %v316 = vld [vmem:[%s1 + $0xe8] sm:$0xff]
        %v317 = vld [vmem:[%s1 + $0xf0] sm:$0xff]
        %v318 = vld [vmem:[%s1 + $0xf8] sm:$0xff]
        %319 = vmatprep.subr.mxu0 0.0
        %320 = vmatpush1.msra.mxu0 %v287
        %321 = vmatprep.subr.mxu0 0.0
        %322 = vmatpush1.msra.mxu0 %v288
        %323 = vmatprep.subr.mxu0 0.0
        %324 = vmatpush1.msra.mxu0 %v289
        %325 = vmatprep.subr.mxu0 0.0
        %326 = vmatpush1.msra.mxu0 %v290
        %327 = vmatprep.subr.mxu0 0.0
        %328 = vmatpush1.msra.mxu0 %v291
        %329 = vmatprep.subr.mxu0 0.0
        %330 = vmatpush1.msra.mxu0 %v292
        %331 = vmatprep.subr.mxu0 0.0
        %332 = vmatpush1.msra.mxu0 %v293
        %333 = vmatprep.subr.mxu0 0.0
        %334 = vmatpush1.msra.mxu0 %v294
        %335 = vmatprep.subr.mxu0 0.0
        %336 = vmatpush1.msra.mxu0 %v295
        %337 = vmatprep.subr.mxu0 0.0
        %338 = vmatpush1.msra.mxu0 %v296
        %339 = vmatprep.subr.mxu0 0.0
        %340 = vmatpush1.msra.mxu0 %v297
        %341 = vmatprep.subr.mxu0 0.0
        %342 = vmatpush1.msra.mxu0 %v298
        %343 = vmatprep.subr.mxu0 0.0
        %344 = vmatpush1.msra.mxu0 %v299
        %345 = vmatprep.subr.mxu0 0.0
        %346 = vmatpush1.msra.mxu0 %v300
        %347 = vmatprep.subr.mxu0 0.0
        %348 = vmatpush1.msra.mxu0 %v301
        %349 = vmatprep.subr.mxu0 0.0
        %350 = vmatpush1.msra.mxu0 %v302
        %351 = vmatprep.subr.mxu0 0.0
        %352 = vmatpush1.msra.mxu0 %v303
        %353 = vmatprep.subr.mxu0 0.0
        %354 = vmatpush1.msra.mxu0 %v304
        %355 = vmatprep.subr.mxu0 0.0
        %356 = vmatpush1.msra.mxu0 %v305
        %357 = vmatprep.subr.mxu0 0.0
        %358 = vmatpush1.msra.mxu0 %v306
        %359 = vmatprep.subr.mxu0 0.0
        %360 = vmatpush1.msra.mxu0 %v307
        %361 = vmatprep.subr.mxu0 0.0
        %362 = vmatpush1.msra.mxu0 %v308
        %363 = vmatprep.subr.mxu0 0.0
        %364 = vmatpush1.msra.mxu0 %v309
        %365 = vmatprep.subr.mxu0 0.0
        %366 = vmatpush1.msra.mxu0 %v310
        %367 = vmatprep.subr.mxu0 0.0
        %368 = vmatpush1.msra.mxu0 %v311
        %369 = vmatprep.subr.mxu0 0.0
        %370 = vmatpush1.msra.mxu0 %v312
        %371 = vmatprep.subr.mxu0 0.0
        %372 = vmatpush1.msra.mxu0 %v313
        %373 = vmatprep.subr.mxu0 0.0
        %374 = vmatpush1.msra.mxu0 %v314
        %375 = vmatprep.subr.mxu0 0.0
        %376 = vmatpush1.msra.mxu0 %v315
        %377 = vmatprep.subr.mxu0 0.0
        %378 = vmatpush1.msra.mxu0 %v316
        %379 = vmatprep.subr.mxu0 0.0
        %380 = vmatpush1.msra.mxu0 %v317
        %381 = vmatprep.subr.mxu0 0.0
        %382 = vmatpush1.msra.mxu0 %v318
        %383 = vmatprep.mubr.f32.mxu0 %v284
        %384 = vmatmul.mubr.f32.gmra.mrb[0].mxu0 %v283
        %v385 = vpop.f32.mrb[0].mxu0
        %v386 = vadd.f32 0.0, %v385
        %v387 = vpop.f32.mrb[0].mxu0
        %388 = vmatprep.mubr.f32.mxu0 %v286
        %389 = vmatmul.mubr.f32.gmra.mrb[0].mxu0 %v285
        %v390 = vpop.f32.mrb[0].mxu0
        %v391 = vadd.f32 0.0, %v390
        %v392 = vpop.f32.mrb[0].mxu0
        %393 = vdwg.mxu0
        %v394 = vld [vmem:[%s3] sm:$0xff]
        %v395 = vld [vmem:[%s4] sm:$0xff]
        %397 = vset.pattern.permute.xlu0 0
        %398 = vperm.xlu0 %397, %v395
        %v399 = vpop.permute.xlu0 %398
        %vm401 = vcmask 130048
        %v403 = vsel %vm401, %v394, 0
        %405 = vmatprep.subr.mxu0 0.0
        %406 = vmatpush1.msra.mxu0 %v386
        %407 = vmatprep.subr.mxu0 0.0
        %408 = vmatpush1.msra.mxu0 %v391
        %409 = vmatprep.subr.mxu0 0.0
        %410 = vmatpush1.msra.mxu0 0.0
        %411 = vmatprep.subr.mxu0 0.0
        %412 = vmatpush1.msra.mxu0 0.0
        %413 = vmatprep.subr.mxu0 0.0
        %414 = vmatpush1.msra.mxu0 0.0
        %415 = vmatprep.subr.mxu0 0.0
        %416 = vmatpush1.msra.mxu0 0.0
        %417 = vmatprep.subr.mxu0 0.0
        %418 = vmatpush1.msra.mxu0 0.0
        %419 = vmatprep.subr.mxu0 0.0
        %420 = vmatpush1.msra.mxu0 0.0
        %421 = vmatprep.subr.mxu0 0.0
        %422 = vmatpush1.msra.mxu0 0.0
        %423 = vmatprep.subr.mxu0 0.0
        %424 = vmatpush1.msra.mxu0 0.0
        %425 = vmatprep.subr.mxu0 0.0
        %426 = vmatpush1.msra.mxu0 0.0
        %427 = vmatprep.subr.mxu0 0.0
        %428 = vmatpush1.msra.mxu0 0.0
        %429 = vmatprep.subr.mxu0 0.0
        %430 = vmatpush1.msra.mxu0 0.0
        %431 = vmatprep.subr.mxu0 0.0
        %432 = vmatpush1.msra.mxu0 0.0
        %433 = vmatprep.subr.mxu0 0.0
        %434 = vmatpush1.msra.mxu0 0.0
        %435 = vmatprep.subr.mxu0 0.0
        %436 = vmatpush1.msra.mxu0 0.0
        %437 = vmatprep.subr.mxu0 0.0
        %438 = vmatpush1.msra.mxu0 0.0
        %439 = vmatprep.subr.mxu0 0.0
        %440 = vmatpush1.msra.mxu0 0.0
        %441 = vmatprep.subr.mxu0 0.0
        %442 = vmatpush1.msra.mxu0 0.0
        %443 = vmatprep.subr.mxu0 0.0
        %444 = vmatpush1.msra.mxu0 0.0
        %445 = vmatprep.subr.mxu0 0.0
        %446 = vmatpush1.msra.mxu0 0.0
        %447 = vmatprep.subr.mxu0 0.0
        %448 = vmatpush1.msra.mxu0 0.0
        %449 = vmatprep.subr.mxu0 0.0
        %450 = vmatpush1.msra.mxu0 0.0
        %451 = vmatprep.subr.mxu0 0.0
        %452 = vmatpush1.msra.mxu0 0.0
        %453 = vmatprep.subr.mxu0 0.0
        %454 = vmatpush1.msra.mxu0 0.0
        %455 = vmatprep.subr.mxu0 0.0
        %456 = vmatpush1.msra.mxu0 0.0
        %457 = vmatprep.subr.mxu0 0.0
        %458 = vmatpush1.msra.mxu0 0.0
        %459 = vmatprep.subr.mxu0 0.0
        %460 = vmatpush1.msra.mxu0 0.0
        %461 = vmatprep.subr.mxu0 0.0
        %462 = vmatpush1.msra.mxu0 0.0
        %463 = vmatprep.subr.mxu0 0.0
        %464 = vmatpush1.msra.mxu0 0.0
        %465 = vmatprep.subr.mxu0 0.0
        %466 = vmatpush1.msra.mxu0 0.0
        %467 = vmatprep.subr.mxu0 0.0
        %468 = vmatpush1.msra.mxu0 0.0
        %469 = vmatprep.mubr.f32.mxu0 0.0
        %470 = vmatmul.mubr.f32.gmra.mrb[0].mxu0 %v403
        %v471 = vpop.f32.mrb[0].mxu0
        %v472 = vadd.f32 %v399, %v471
        %v473 = vpop.f32.mrb[0].mxu0
        %474 = vdwg.mxu0
        %v475 = vadd.f32 %v472, 3.0
        %v476 = vmax.f32 %v475, 0.0
        %v477 = vmin.f32 %v476, 6.0
        %v478 = vmul.f32 %v472, %v477
        %v479 = vmul.f32 %v478, 0.16666667
        %v480 = vld [vmem:[%s5] sm:$0xff]
        %v481 = vld [vmem:[%s5 + $0x8] sm:$0xff]
        %v482 = vld [vmem:[%s6] sm:$0xff]
        %v483 = vld [vmem:[%s6 + $0x8] sm:$0xff]
        %485 = vset.pattern.permute.xlu0 0
        %486 = vperm.xlu0 %485, %v482
        %v487 = vpop.permute.xlu0 %486
        %490 = vset.pattern.permute.xlu0 0
        %491 = vperm.xlu0 %490, %v483
        %v492 = vpop.permute.xlu0 %491
        %vm494 = vcmask 64512
        %v496 = vsel %vm494, %v480, 0
        %v499 = vsel %vm494, %v481, 0
        %501 = vmatprep.subr.mxu0 0.0
        %502 = vmatpush1.msra.mxu0 %v479
        %503 = vmatprep.subr.mxu0 0.0
        %504 = vmatpush1.msra.mxu0 0.0
        %505 = vmatprep.subr.mxu0 0.0
        %506 = vmatpush1.msra.mxu0 0.0
        %507 = vmatprep.subr.mxu0 0.0
        %508 = vmatpush1.msra.mxu0 0.0
        %509 = vmatprep.subr.mxu0 0.0
        %510 = vmatpush1.msra.mxu0 0.0
        %511 = vmatprep.subr.mxu0 0.0
        %512 = vmatpush1.msra.mxu0 0.0
        %513 = vmatprep.subr.mxu0 0.0
        %514 = vmatpush1.msra.mxu0 0.0
        %515 = vmatprep.subr.mxu0 0.0
        %516 = vmatpush1.msra.mxu0 0.0
        %517 = vmatprep.subr.mxu0 0.0
        %518 = vmatpush1.msra.mxu0 0.0
        %519 = vmatprep.subr.mxu0 0.0
        %520 = vmatpush1.msra.mxu0 0.0
        %521 = vmatprep.subr.mxu0 0.0
        %522 = vmatpush1.msra.mxu0 0.0
        %523 = vmatprep.subr.mxu0 0.0
        %524 = vmatpush1.msra.mxu0 0.0
        %525 = vmatprep.subr.mxu0 0.0
        %526 = vmatpush1.msra.mxu0 0.0
        %527 = vmatprep.subr.mxu0 0.0
        %528 = vmatpush1.msra.mxu0 0.0
        %529 = vmatprep.subr.mxu0 0.0
        %530 = vmatpush1.msra.mxu0 0.0
        %531 = vmatprep.subr.mxu0 0.0
        %532 = vmatpush1.msra.mxu0 0.0
        %533 = vmatprep.subr.mxu0 0.0
        %534 = vmatpush1.msra.mxu0 0.0
        %535 = vmatprep.subr.mxu0 0.0
        %536 = vmatpush1.msra.mxu0 0.0
        %537 = vmatprep.subr.mxu0 0.0
        %538 = vmatpush1.msra.mxu0 0.0
        %539 = vmatprep.subr.mxu0 0.0
        %540 = vmatpush1.msra.mxu0 0.0
        %541 = vmatprep.subr.mxu0 0.0
        %542 = vmatpush1.msra.mxu0 0.0
        %543 = vmatprep.subr.mxu0 0.0
        %544 = vmatpush1.msra.mxu0 0.0
        %545 = vmatprep.subr.mxu0 0.0
        %546 = vmatpush1.msra.mxu0 0.0
        %547 = vmatprep.subr.mxu0 0.0
        %548 = vmatpush1.msra.mxu0 0.0
        %549 = vmatprep.subr.mxu0 0.0
        %550 = vmatpush1.msra.mxu0 0.0
        %551 = vmatprep.subr.mxu0 0.0
        %552 = vmatpush1.msra.mxu0 0.0
        %553 = vmatprep.subr.mxu0 0.0
        %554 = vmatpush1.msra.mxu0 0.0
        %555 = vmatprep.subr.mxu0 0.0
        %556 = vmatpush1.msra.mxu0 0.0
        %557 = vmatprep.subr.mxu0 0.0
        %558 = vmatpush1.msra.mxu0 0.0
        %559 = vmatprep.subr.mxu0 0.0
        %560 = vmatpush1.msra.mxu0 0.0
        %561 = vmatprep.subr.mxu0 0.0
        %562 = vmatpush1.msra.mxu0 0.0
        %563 = vmatprep.subr.mxu0 0.0
        %564 = vmatpush1.msra.mxu0 0.0
        %565 = vmatprep.mubr.f32.mxu0 0.0
        %566 = vmatmul.mubr.f32.gmra.mrb[0].mxu0 %v496
        %v567 = vpop.f32.mrb[0].mxu0
        %v568 = vadd.f32 %v487, %v567
        %v569 = vpop.f32.mrb[0].mxu0
        %570 = vmatprep.mubr.f32.mxu0 0.0
        %571 = vmatmul.mubr.f32.gmra.mrb[0].mxu0 %v499
        %v572 = vpop.f32.mrb[0].mxu0
        %v573 = vadd.f32 %v492, %v572
        %v574 = vpop.f32.mrb[0].mxu0
        %575 = vdwg.mxu0
        %v576 = vld [vmem:[%s2] sm:$0xff]
        %v577 = vld [vmem:[%s2 + $0x8] sm:$0xff]
        %v578 = vld [vmem:[%s2 + $0x10] sm:$0xff]
        %v579 = vld [vmem:[%s2 + $0x18] sm:$0xff]
        %v581 = vsel %vm401, %v568, 0
        %v584 = vsel %vm401, %v573, 0
        %586 = vmatprep.subr.mxu0 %v577
        %587 = vmatpush1.msra.mxu0 %v576
        %588 = vmatprep.subr.mxu0 %v579
        %589 = vmatpush1.msra.mxu0 %v578
        %590 = vmatprep.subr.mxu0 0.0
        %591 = vmatpush1.msra.mxu0 0.0
        %592 = vmatprep.subr.mxu0 0.0
        %593 = vmatpush1.msra.mxu0 0.0
        %594 = vmatprep.subr.mxu0 0.0
        %595 = vmatpush1.msra.mxu0 0.0
        %596 = vmatprep.subr.mxu0 0.0
        %597 = vmatpush1.msra.mxu0 0.0
        %598 = vmatprep.subr.mxu0 0.0
        %599 = vmatpush1.msra.mxu0 0.0
        %600 = vmatprep.subr.mxu0 0.0
        %601 = vmatpush1.msra.mxu0 0.0
        %602 = vmatprep.subr.mxu0 0.0
        %603 = vmatpush1.msra.mxu0 0.0
        %604 = vmatprep.subr.mxu0 0.0
        %605 = vmatpush1.msra.mxu0 0.0
        %606 = vmatprep.subr.mxu0 0.0
        %607 = vmatpush1.msra.mxu0 0.0
        %608 = vmatprep.subr.mxu0 0.0
        %609 = vmatpush1.msra.mxu0 0.0
        %610 = vmatprep.subr.mxu0 0.0
        %611 = vmatpush1.msra.mxu0 0.0
        %612 = vmatprep.subr.mxu0 0.0
        %613 = vmatpush1.msra.mxu0 0.0
        %614 = vmatprep.subr.mxu0 0.0
        %615 = vmatpush1.msra.mxu0 0.0
        %616 = vmatprep.subr.mxu0 0.0
        %617 = vmatpush1.msra.mxu0 0.0
        %618 = vmatprep.subr.mxu0 0.0
        %619 = vmatpush1.msra.mxu0 0.0
        %620 = vmatprep.subr.mxu0 0.0
        %621 = vmatpush1.msra.mxu0 0.0
        %622 = vmatprep.subr.mxu0 0.0
        %623 = vmatpush1.msra.mxu0 0.0
        %624 = vmatprep.subr.mxu0 0.0
        %625 = vmatpush1.msra.mxu0 0.0
        %626 = vmatprep.subr.mxu0 0.0
        %627 = vmatpush1.msra.mxu0 0.0
        %628 = vmatprep.subr.mxu0 0.0
        %629 = vmatpush1.msra.mxu0 0.0
        %630 = vmatprep.subr.mxu0 0.0
        %631 = vmatpush1.msra.mxu0 0.0
        %632 = vmatprep.subr.mxu0 0.0
        %633 = vmatpush1.msra.mxu0 0.0
        %634 = vmatprep.subr.mxu0 0.0
        %635 = vmatpush1.msra.mxu0 0.0
        %636 = vmatprep.subr.mxu0 0.0
        %637 = vmatpush1.msra.mxu0 0.0
        %638 = vmatprep.subr.mxu0 0.0
        %639 = vmatpush1.msra.mxu0 0.0
        %640 = vmatprep.subr.mxu0 0.0
        %641 = vmatpush1.msra.mxu0 0.0
        %642 = vmatprep.subr.mxu0 0.0
        %643 = vmatpush1.msra.mxu0 0.0
        %644 = vmatprep.subr.mxu0 0.0
        %645 = vmatpush1.msra.mxu0 0.0
        %646 = vmatprep.subr.mxu0 0.0
        %647 = vmatpush1.msra.mxu0 0.0
        %648 = vmatprep.subr.mxu0 0.0
        %649 = vmatpush1.msra.mxu0 0.0
        %650 = vmatprep.mubr.f32.mxu0 0.0
        %651 = vmatmul.mubr.f32.gmra.mrb[0].mxu0 %v581
        %v652 = vpop.f32.mrb[0].mxu0
        %v653 = vadd.f32 0.0, %v652
        %v654 = vpop.f32.mrb[0].mxu0
        %v655 = vadd.f32 0.0, %v654
        %656 = vmatprep.mubr.f32.mxu0 0.0
        %657 = vmatmul.mubr.f32.gmra.mrb[0].mxu0 %v584
        %v658 = vpop.f32.mrb[0].mxu0
        %v659 = vadd.f32 0.0, %v658
        %v660 = vpop.f32.mrb[0].mxu0
        %v661 = vadd.f32 0.0, %v660
        %662 = vdwg.mxu0
        %v663 = vxor.u32 %v653, 2147483648
        %v664 = vxor.u32 %v655, 2147483648
        %v665 = vxor.u32 %v659, 2147483648
        %v666 = vxor.u32 %v661, 2147483648
        %v667 = vmul.f32 %v663, 1.442695
        %v668 = vpow.pop %v667
        %v669 = vmul.f32 %v664, 1.442695
        %v670 = vpow.pop %v669
        %v671 = vmul.f32 %v665, 1.442695
        %v672 = vpow.pop %v671
        %v673 = vmul.f32 %v666, 1.442695
        %v674 = vpow.pop %v673
        %v675 = vadd.f32 %v668, 1.0
        %v676 = vadd.f32 %v670, 1.0
        %v677 = vadd.f32 %v672, 1.0
        %v678 = vadd.f32 %v674, 1.0
        %v679 = vrcp.pop %v675
        %v680 = vmul.f32 1.0, %v679
        %v681 = vrcp.pop %v676
        %v682 = vmul.f32 1.0, %v681
        %v683 = vrcp.pop %v677
        %v684 = vmul.f32 1.0, %v683
        %v685 = vrcp.pop %v678
        %v686 = vmul.f32 1.0, %v685
        %v687 = vmul.f32 %v283, %v680
        %v688 = vmul.f32 %v284, %v682
        %v689 = vmul.f32 %v285, %v684
        %v690 = vmul.f32 %v286, %v686
        %691 = vst [vmem:[%s274] sm:$0xff] %v687
        %692 = vst [vmem:[%s274 + $0x8] sm:$0xff] %v688
        %693 = vst [vmem:[%s274 + $0x10] sm:$0xff] %v689
        %694 = vst [vmem:[%s274 + $0x18] sm:$0xff] %v690
        %s695 = sand.u32 %s181, 1
        %s696 = scalar_lea.sflag [#allocation3], %s695
        %s697 = sand.u32 %s181, 1
        %s698 = smul.addr %s697, 32
        %s699 = scalar_lea.vmem [#allocation2], %s698
        // Predicated region
        $region49: #{tpu_custom_call.1} parent=47 // pred_check
          %p700 = pneg %p191
        $region50: #{tpu_custom_call.1} parent=47 // pred_check_branch
          %702 = sbr.rel (%p700) target = $region52
        $region51: #{tpu_custom_call.1} parent=47 // pred_region
          %s703 = smul.u32 2, %s21
          %s705 = ssub.s32 512, 512
          %706 = vsyncadd %s696, %s705
          %s707 = smul.addr %s703, 2
          %s708 = smul.addr %s707, 128
          %s709 = scalar_lea.hbm %s7, %s708
          %s710 = sshll.u32 %s699, 4
          %s711 = int_to_ptr.vmem [resolvable:$true] %s710
          %716 = dma.vmem_to_hbm [thread:$0]  %s711, 512, %s709, %s696, 256, 256, 16
        $region52: #{tpu_custom_call.1} parent=47 // pred_fallthru
          _
      $region48: #{tpu_custom_call.1} parent=5 // pred_fallthru
        _
      %p717 = scmp.le.s32.totalorder 2, %s16
      // Predicated region
      $region53: #{tpu_custom_call.1} parent=5 // pred_check
        %p718 = pneg %p717
      $region54: #{tpu_custom_call.1} parent=5 // pred_check_branch
        %720 = sbr.rel (%p718) target = $region56
      $region55: #{tpu_custom_call.1} parent=5 // pred_region
        %s721 = ssub.s32 %s16, 2
        // Predicated region
        $region57: #{tpu_custom_call.1} parent=55 // pred_check
          %p722 = pneg %p197
        $region58: #{tpu_custom_call.1} parent=55 // pred_check_branch
          %724 = sbr.rel (%p722) target = $region60
        $region59: #{tpu_custom_call.1} parent=55 // pred_region
          %s725 = sand.u32 %s182, 1
          %s726 = scalar_lea.sflag [#allocation3], %s725
          %s727 = sand.u32 %s182, 1
          %s728 = smul.addr %s727, 32
          %s729 = scalar_lea.vmem [#allocation2], %s728
          %730 = dma.done %s726, 512
        $region60: #{tpu_custom_call.1} parent=55 // pred_fallthru
          _
      $region56: #{tpu_custom_call.1} parent=5 // pred_fallthru
        _
    $region6: #{tpu_custom_call.1} parent=1 // loop_footer
      %s20 = sadd.s32 1, %s16
    $region7: #{tpu_custom_call.1} parent=1 // loop_footer_branch
      %15 = sbr.rel target = $region3
    $region8: #{tpu_custom_call.1} parent=1 // loop_exit
      _
    %731 = vsyncpa [#allocation3], 1
    %s732 = scalar_lea.sflag [#allocation3], 1
    %733 = vsyncpa %s732, 1

</llo_original>
